<compile_context>
chip_gen: v6e
topology: v6e:2x2x1
jax: 0.10.0
libtpu: 0.0.40
codegen_flags: <defaults>
</compile_context>

<pallas_src>
import functools

import jax
import jax.numpy as jnp
from jax.experimental import pallas as pl
from jax.experimental.pallas import tpu as pltpu


def _round_up(x: int, m: int) -> int:
    return ((x + m - 1) // m) * m


def _vmem_cap_bytes() -> int:
    """Conservative per-core VMEM cap (leave headroom for pipeline scratch)."""
    try:
        info = pltpu.get_tpu_info()
        cap = getattr(info, "vmem_capacity_bytes", None)
        if cap:
            return int(cap) * 3 // 4
    except Exception:
        pass
    return 48 * 1024 * 1024  # safely below v7x's 64 MiB physical VMEM


# ----------------------------------------------------------------------------
# Kernel body: one batch tile.
#   h    = relu(x @ W1 + b1)              (MXU, f32 accumulation; bias/ReLU on VPU)
#   out  = h @ [Wmu | Wlv] + [bmu | blv]  (single fused lane-dense head matmul)
# ----------------------------------------------------------------------------
def vae_encoder_kernel(x_ref, w1_ref, b1_ref, wh_ref, bh_ref, out_ref):
    # x streamed in native dtype; cast to compute dtype in-register (free on f32).
    x = x_ref[...].astype(w1_ref.dtype)

    h = jnp.dot(x, w1_ref[...], preferred_element_type=jnp.float32)
    h = jnp.maximum(h + b1_ref[...], 0.0)

    heads = jnp.dot(h.astype(wh_ref.dtype), wh_ref[...],
                    preferred_element_type=jnp.float32)
    out_ref[...] = (heads + bh_ref[...]).astype(out_ref.dtype)


# ----------------------------------------------------------------------------
# One-time parameter preparation (call once, reuse across forward calls).
# ----------------------------------------------------------------------------
def prepare_params(params, compute_dtype=None):
    """Pad/fuse PyTorch-style params into the kernel's lane-dense layout.

    Returns (prepared_dict, latent_dim). Do this ONCE and cache the result;
    it is the only place weights are copied/cast.
    """
    w1, b1 = params["w1"], params["b1"]
    wmu, bmu = params["wmu"], params["bmu"]
    wlv, blv = params["wlv"], params["blv"]

    input_dim, hidden_dim = w1.shape
    latent_dim = wmu.shape[1]
    cdt = jnp.dtype(compute_dtype) if compute_dtype is not None else w1.dtype

    Hp = _round_up(hidden_dim, 128)        # padded hidden width (lane-dense h)
    P = _round_up(2 * latent_dim, 128)     # padded fused mu|logvar output width

    w1_p = jnp.zeros((input_dim, Hp), cdt).at[:, :hidden_dim].set(w1.astype(cdt))
    b1_p = jnp.zeros((1, Hp), jnp.float32).at[:, :hidden_dim].set(
        b1.reshape(1, -1).astype(jnp.float32))

    wh_p = (jnp.zeros((Hp, P), cdt)
            .at[:hidden_dim, :latent_dim].set(wmu.astype(cdt))
            .at[:hidden_dim, latent_dim:2 * latent_dim].set(wlv.astype(cdt)))
    bh_p = (jnp.zeros((1, P), jnp.float32)
            .at[:, :latent_dim].set(bmu.reshape(1, -1).astype(jnp.float32))
            .at[:, latent_dim:2 * latent_dim].set(blv.reshape(1, -1).astype(jnp.float32)))

    prepared = {"w1": w1_p, "b1": b1_p, "wh": wh_p, "bh": bh_p}
    return prepared, latent_dim


# ----------------------------------------------------------------------------
# Forward pass.
# ----------------------------------------------------------------------------
@functools.partial(jax.jit, static_argnames=("latent_dim", "tile_b"))
def variational_encoder_forward(x, prepared, latent_dim: int, *, tile_b: int = 512):
    """VAE encoder forward. Returns (mu, logvar), each [B, latent_dim]."""
    w1_p, b1_p = prepared["w1"], prepared["b1"]
    wh_p, bh_p = prepared["wh"], prepared["bh"]

    B, input_dim = x.shape
    Hp = w1_p.shape[1]
    P = wh_p.shape[1]
    cdt = w1_p.dtype
    out_dtype = x.dtype

    itx = jnp.dtype(x.dtype).itemsize
    itc = jnp.dtype(cdt).itemsize

    # --- Batch tile: align to (8,128) rules (16 sublanes if x is sub-32-bit),
    #     and guarantee >= 2 grid steps when possible so v7x's two TensorCores
    #     both get work under dimension_semantics=("parallel",).
    align = 16 if itx < 4 else 8
    tb = _round_up(max(1, min(tile_b, B)), align)
    if -(-B // tb) == 1 and B >= 2 * align:
        tb = _round_up(-(-B // 2), align)
    Bp = _round_up(B, tb)
    x_in = x if Bp == B else jnp.pad(x, ((0, Bp - B), (0, 0)))  # only pad if ragged
    grid = (Bp // tb,)

    # --- VMEM budget: double-buffered x/out tiles, single-buffered resident
    #     weights, plus the in-kernel f32 hidden (+ compute-dtype copy) and
    #     f32 head accumulator. Capped below physical VMEM.
    est = (2 * tb * input_dim * itx                      # x tile (x2 buffers)
           + 2 * tb * P * jnp.dtype(out_dtype).itemsize  # out tile (x2 buffers)
           + (input_dim * Hp + Hp * P) * itc             # weights (x1, Buffered(1))
           + (Hp + P) * 4                                # biases (f32, x1)
           + tb * Hp * (4 + itc)                         # f32 h + cast copy for head
           + tb * P * 4)                                 # f32 heads accumulator
    vmem_limit = int(min(_vmem_cap_bytes(), max(2 * est, 8 * 1024 * 1024)))

    cost = pl.CostEstimate(
        flops=2 * Bp * (input_dim * Hp + Hp * P),
        transcendentals=0,
        bytes_accessed=(Bp * input_dim * itx + Bp * P * jnp.dtype(out_dtype).itemsize
                        + (input_dim * Hp + Hp * P) * itc + (Hp + P) * 4),
    )

    resident = dict(pipeline_mode=pl.Buffered(1))  # grid-invariant -> single buffer

    fused = pl.pallas_call(
        vae_encoder_kernel,
        out_shape=jax.ShapeDtypeStruct((Bp, P), out_dtype),
        grid=grid,
        in_specs=[
            pl.BlockSpec((tb, input_dim), lambda i: (i, 0)),             # x: streamed
            pl.BlockSpec((input_dim, Hp), lambda i: (0, 0), **resident),  # W1
            pl.BlockSpec((1, Hp), lambda i: (0, 0), **resident),          # b1
            pl.BlockSpec((Hp, P), lambda i: (0, 0), **resident),          # [Wmu|Wlv]
            pl.BlockSpec((1, P), lambda i: (0, 0), **resident),           # [bmu|blv]
        ],
        out_specs=pl.BlockSpec((tb, P), lambda i: (i, 0)),               # fused mu|logvar
        compiler_params=pltpu.CompilerParams(
            dimension_semantics=("parallel",),
            vmem_limit_bytes=vmem_limit,
        ),
        cost_estimate=cost,
    )(x_in, w1_p, b1_p, wh_p, bh_p)

    # Strip batch/lane padding and split the fused heads in the wrapper.
    mu = fused[:B, :latent_dim]
    logvar = fused[:B, latent_dim:2 * latent_dim]
    return mu, logvar
    # TODO(synk): add a K ("arbitrary") grid axis over input_dim (f32 h scratch
    # accumulator) once input_dim*Hp stops fitting resident VMEM — threshold is
    # ~half as large on v7x (64 MiB) as on v5e/v6e (128 MiB). Unneeded here.


# ----------------------------------------------------------------------------
# Init + pure-JAX reference + self-test.
# ----------------------------------------------------------------------------
def init_params(key, input_dim, hidden_dim, latent_dim, dtype=jnp.float32):
    """PyTorch-Linear-style init: U(-1/sqrt(fan_in), 1/sqrt(fan_in)).

    Weights stored as [in_features, out_features] (already transposed for x @ W).
    Biases kept 2-D ([1, out]) for clean TPU layout/broadcast.
    """
    ks = jax.random.split(key, 6)

    def lin(kw, kb, fan_in, fan_out):
        bound = 1.0 / jnp.sqrt(fan_in)
        w = jax.random.uniform(kw, (fan_in, fan_out), dtype, -bound, bound)
        b = jax.random.uniform(kb, (1, fan_out), dtype, -bound, bound)
        return w, b

    w1, b1 = lin(ks[0], ks[1], input_dim, hidden_dim)
    wmu, bmu = lin(ks[2], ks[3], hidden_dim, latent_dim)
    wlv, blv = lin(ks[4], ks[5], hidden_dim, latent_dim)
    return {"w1": w1, "b1": b1, "wmu": wmu, "bmu": bmu, "wlv": wlv, "blv": blv}


def reference_forward(x, p):
    h = jnp.maximum(x @ p["w1"] + p["b1"], 0.0)
    return h @ p["wmu"] + p["bmu"], h @ p["wlv"] + p["blv"]


if __name__ == "__main__":
    batch, input_dim, hidden_dim, latent_dim = 8, 64, 32, 8

    key = jax.random.PRNGKey(0)
    kx, kp = jax.random.split(key)
    x = jax.random.normal(kx, (batch, input_dim), jnp.float32)
    params = init_params(kp, input_dim, hidden_dim, latent_dim)

    # f32 path: exact match against the pure-JAX reference.
    prepared_f32, ld = prepare_params(params)                 # one-time prep
    mu, logvar = variational_encoder_forward(x, prepared_f32, ld)
    jax.block_until_ready((mu, logvar))

    mu_ref, lv_ref = reference_forward(x, params)
    assert mu.shape == (batch, latent_dim) and logvar.shape == (batch, latent_dim)
    assert jnp.allclose(mu, mu_ref, atol=1e-5, rtol=1e-5)
    assert jnp.allclose(logvar, lv_ref, atol=1e-5, rtol=1e-5)

    # bf16 compute path (bf16 weights, in-kernel x cast, f32 accumulation).
    prepared_bf16, _ = prepare_params(params, compute_dtype=jnp.bfloat16)
    mu_bf, lv_bf = variational_encoder_forward(x, prepared_bf16, ld)
    jax.block_until_ready((mu_bf, lv_bf))
    assert jnp.allclose(mu_bf, mu_ref, atol=8e-2, rtol=8e-2)
    assert jnp.allclose(lv_bf, lv_ref, atol=8e-2, rtol=8e-2)

    print("KERNEL_OK")
</pallas_src>

<mosaic_0001>
module attributes {stable_mosaic.version = 11 : i64} {
  func.func @vae_encoder_kernel(%arg0: i32, %arg1: memref<8x64xf32, #tpu.memory_space<vmem>>, %arg2: memref<64x128xf32, #tpu.memory_space<vmem>>, %arg3: memref<1x128xf32, #tpu.memory_space<vmem>>, %arg4: memref<128x128xf32, #tpu.memory_space<vmem>>, %arg5: memref<1x128xf32, #tpu.memory_space<vmem>>, %arg6: memref<8x128xf32, #tpu.memory_space<vmem>>) attributes {dimension_semantics = [#tpu.dimension_semantics<parallel>], iteration_bounds = array<i64: 1>, scalar_prefetch = 0 : i64, scratch_operands = 0 : i64, tpu.core_type = #tpu.core_type<tc>, window_params = [{transform_indices = @transform_0, window_bounds = array<i64: 8, 64>}, {pipeline_mode = #tpu.pipeline_mode<synchronous>, transform_indices = @transform_1, window_bounds = array<i64: 64, 128>}, {pipeline_mode = #tpu.pipeline_mode<synchronous>, transform_indices = @transform_2, window_bounds = array<i64: 1, 128>}, {pipeline_mode = #tpu.pipeline_mode<synchronous>, transform_indices = @transform_3, window_bounds = array<i64: 128, 128>}, {pipeline_mode = #tpu.pipeline_mode<synchronous>, transform_indices = @transform_4, window_bounds = array<i64: 1, 128>}, {transform_indices = @transform_5, window_bounds = array<i64: 8, 128>}]} {
    %c0 = arith.constant 0 : index
    %c0_0 = arith.constant 0 : index
    %0 = vector.load %arg1[%c0, %c0_0] : memref<8x64xf32, #tpu.memory_space<vmem>>, vector<8x64xf32>
    %c0_1 = arith.constant 0 : index
    %c0_2 = arith.constant 0 : index
    %1 = vector.load %arg2[%c0_1, %c0_2] : memref<64x128xf32, #tpu.memory_space<vmem>>, vector<64x128xf32>
    %cst = arith.constant dense<0.000000e+00> : vector<8x128xf32>
    %2 = tpu.matmul %0, %1, %cst {dimension_numbers = #tpu.dot_dimension_numbers<[1], [0], [0], [1], [0, 0, 1, 1], [], []>} : vector<8x64xf32>, vector<64x128xf32>, vector<8x128xf32> -> vector<8x128xf32>
    %c0_3 = arith.constant 0 : index
    %c0_4 = arith.constant 0 : index
    %3 = vector.load %arg3[%c0_3, %c0_4] : memref<1x128xf32, #tpu.memory_space<vmem>>, vector<1x128xf32>
    %4 = vector.broadcast %3 : vector<1x128xf32> to vector<8x128xf32>
    %5 = arith.addf %2, %4 : vector<8x128xf32>
    %cst_5 = arith.constant 0.000000e+00 : f32
    %6 = vector.broadcast %cst_5 : f32 to vector<8x128xf32>
    %7 = arith.maximumf %5, %6 : vector<8x128xf32>
    %c0_6 = arith.constant 0 : index
    %c0_7 = arith.constant 0 : index
    %8 = vector.load %arg4[%c0_6, %c0_7] : memref<128x128xf32, #tpu.memory_space<vmem>>, vector<128x128xf32>
    %cst_8 = arith.constant dense<0.000000e+00> : vector<8x128xf32>
    %9 = tpu.matmul %7, %8, %cst_8 {dimension_numbers = #tpu.dot_dimension_numbers<[1], [0], [0], [1], [0, 0, 1, 1], [], []>} : vector<8x128xf32>, vector<128x128xf32>, vector<8x128xf32> -> vector<8x128xf32>
    %c0_9 = arith.constant 0 : index
    %c0_10 = arith.constant 0 : index
    %10 = vector.load %arg5[%c0_9, %c0_10] : memref<1x128xf32, #tpu.memory_space<vmem>>, vector<1x128xf32>
    %11 = vector.broadcast %10 : vector<1x128xf32> to vector<8x128xf32>
    %12 = arith.addf %9, %11 : vector<8x128xf32>
    %c0_11 = arith.constant 0 : index
    %c0_12 = arith.constant 0 : index
    %13 = vector.load %arg6[%c0_11, %c0_12] : memref<8x128xf32, #tpu.memory_space<vmem>>, vector<8x128xf32>
    tpu.vector_store %arg6[%c0_11, %c0_12], %12 {strides = array<i32>} : memref<8x128xf32, #tpu.memory_space<vmem>>, vector<8x128xf32>,
    return
  }
  func.func @transform_0(%arg0: i32) -> (i32, i32) {
    %c0_i32 = arith.constant 0 : i32
    %c0_i32_0 = arith.constant 0 : i32
    return %arg0, %c0_i32 : i32, i32
  }
  func.func @transform_1(%arg0: i32) -> (i32, i32) {
    %c0_i32 = arith.constant 0 : i32
    %c0_i32_0 = arith.constant 0 : i32
    %c0_i32_1 = arith.constant 0 : i32
    return %c0_i32, %c0_i32_0 : i32, i32
  }
  func.func @transform_2(%arg0: i32) -> (i32, i32) {
    %c0_i32 = arith.constant 0 : i32
    %c0_i32_0 = arith.constant 0 : i32
    %c0_i32_1 = arith.constant 0 : i32
    return %c0_i32, %c0_i32_0 : i32, i32
  }
  func.func @transform_3(%arg0: i32) -> (i32, i32) {
    %c0_i32 = arith.constant 0 : i32
    %c0_i32_0 = arith.constant 0 : i32
    %c0_i32_1 = arith.constant 0 : i32
    return %c0_i32, %c0_i32_0 : i32, i32
  }
  func.func @transform_4(%arg0: i32) -> (i32, i32) {
    %c0_i32 = arith.constant 0 : i32
    %c0_i32_0 = arith.constant 0 : i32
    %c0_i32_1 = arith.constant 0 : i32
    return %c0_i32, %c0_i32_0 : i32, i32
  }
  func.func @transform_5(%arg0: i32) -> (i32, i32) {
    %c0_i32 = arith.constant 0 : i32
    %c0_i32_0 = arith.constant 0 : i32
    return %arg0, %c0_i32 : i32, i32
  }
}

</mosaic_0001>

<llo_original>
// kernel: variational_encoder_forward.1
$region0: #{variational_encoder_forward.1}
  #allocation0 [shape = 'u32[]', space=smem, size = 0x4, offset = 0x4, fixed_abs, tag = 'smem constant byte address 0x4 - core index']
  #allocation1 [shape = 'u32[144,128]{1,0:T(1,128)}', space=vmem, size = 0x12000, scoped, tag = 'internal scratch']
  %s0 = inlined_call_operand.hbm [shape: f32[8,64], index: 0, kind: input, shape index: {}]
  %s1 = inlined_call_operand.hbm [shape: f32[64,128], index: 1, kind: input, shape index: {}]
  %s2 = inlined_call_operand.vmem [shape: f32[1,128], index: 2, kind: input, shape index: {}]
  %s3 = inlined_call_operand.hbm [shape: f32[128,128], index: 3, kind: input, shape index: {}]
  %s4 = inlined_call_operand.vmem [shape: f32[1,128], index: 4, kind: input, shape index: {}]
  %s5 = inlined_call_operand.vmem [shape: f32[8,128], index: 5, kind: output, shape index: {}]
  %s6 = sld [smem:[#allocation0]]
  $region42: #{variational_encoder_forward.1} parent=0
    _
  %s8 = ssub.s32 1, %s6
  %s9 = scalar_select 0, %s8, %s6
  $region1: #{variational_encoder_forward.1} parent=0
    #allocation2 [shape = 'u8[4096]{0}', space=vmem, size = 0x1000, scoped, tag = 'input window, operand 0, single buffered']
    #allocation3 [shape = 's32[1]{0}', space=sflag, size = 0x4, scoped, tag = 'scoped memory for variational_encoder_forward.1']
    #allocation4 [shape = 'u8[32768]{0}', space=vmem, size = 0x8000, scoped, tag = 'input window, operand 1, single buffered']
    #allocation5 [shape = 's32[1]{0}', space=sflag, size = 0x4, scoped, tag = 'scoped memory for variational_encoder_forward.1']
    #allocation6 [shape = 'u8[65536]{0}', space=vmem, size = 0x10000, scoped, tag = 'input window, operand 3, single buffered']
    %10 = vsyncpa [#allocation3], 0
    %11 = vsyncpa [#allocation5], 0
    // Predicated region
    $region2: #{variational_encoder_forward.1} parent=1 // pred_check
      _
    $region3: #{variational_encoder_forward.1} parent=1 // pred_check_branch
      %13 = sbr.rel (0) target = $region5
    $region4: #{variational_encoder_forward.1} parent=1 // pred_region
      %s15 = ssub.s32 128, 128
      %16 = vsyncadd [#allocation3], %s15
      %s18 = sshll.u32 [#allocation2], 4
      %s19 = int_to_ptr.vmem [resolvable:$true] %s18
      %21 = dma.hbm_to_vmem [thread:$0]  %s0, 128, %s19, [#allocation3]
    $region5: #{variational_encoder_forward.1} parent=1 // pred_fallthru
      _
    // Predicated region
    $region6: #{variational_encoder_forward.1} parent=1 // pred_check
      _
    $region7: #{variational_encoder_forward.1} parent=1 // pred_check_branch
      %23 = sbr.rel (0) target = $region9
    $region8: #{variational_encoder_forward.1} parent=1 // pred_region
      %s25 = ssub.s32 1024, 1024
      %26 = vsyncadd [#allocation5], %s25
      %s27 = sshll.u32 [#allocation4], 4
      %s28 = int_to_ptr.vmem [resolvable:$true] %s27
      %33 = dma.hbm_to_vmem [thread:$0]  %s1, 1024, %s28, [#allocation5], 128, 128, 8
    $region9: #{variational_encoder_forward.1} parent=1 // pred_fallthru
      _
    // Predicated region
    $region10: #{variational_encoder_forward.1} parent=1 // pred_check
      _
    $region11: #{variational_encoder_forward.1} parent=1 // pred_check_branch
      %35 = sbr.rel (0) target = $region13
    $region12: #{variational_encoder_forward.1} parent=1 // pred_region
      _
    $region13: #{variational_encoder_forward.1} parent=1 // pred_fallthru
      _
    // Predicated region
    $region14: #{variational_encoder_forward.1} parent=1 // pred_check
      _
    $region15: #{variational_encoder_forward.1} parent=1 // pred_check_branch
      %37 = sbr.rel (0) target = $region17
    $region16: #{variational_encoder_forward.1} parent=1 // pred_region
      %s39 = ssub.s32 2048, 2048
      %40 = vsyncadd [#allocation5], %s39
      %s41 = sshll.u32 [#allocation6], 4
      %s42 = int_to_ptr.vmem [resolvable:$true] %s41
      %47 = dma.hbm_to_vmem [thread:$0]  %s3, 2048, %s42, [#allocation5], 128, 128, 8
    $region17: #{variational_encoder_forward.1} parent=1 // pred_fallthru
      _
    // Predicated region
    $region18: #{variational_encoder_forward.1} parent=1 // pred_check
      _
    $region19: #{variational_encoder_forward.1} parent=1 // pred_check_branch
      %49 = sbr.rel (0) target = $region21
    $region20: #{variational_encoder_forward.1} parent=1 // pred_region
      _
    $region21: #{variational_encoder_forward.1} parent=1 // pred_fallthru
      _
    // Predicated region
    $region22: #{variational_encoder_forward.1} parent=1 // pred_check
      _
    $region23: #{variational_encoder_forward.1} parent=1 // pred_check_branch
      %51 = sbr.rel (0) target = $region25
    $region24: #{variational_encoder_forward.1} parent=1 // pred_region
      %52 = dma.done [#allocation3], 128
    $region25: #{variational_encoder_forward.1} parent=1 // pred_fallthru
      _
    // Predicated region
    $region26: #{variational_encoder_forward.1} parent=1 // pred_check
      _
    $region27: #{variational_encoder_forward.1} parent=1 // pred_check_branch
      %54 = sbr.rel (0) target = $region29
    $region28: #{variational_encoder_forward.1} parent=1 // pred_region
      %55 = dma.done [#allocation5], 1024
    $region29: #{variational_encoder_forward.1} parent=1 // pred_fallthru
      _
    // Predicated region
    $region30: #{variational_encoder_forward.1} parent=1 // pred_check
      _
    $region31: #{variational_encoder_forward.1} parent=1 // pred_check_branch
      %57 = sbr.rel (0) target = $region33
    $region32: #{variational_encoder_forward.1} parent=1 // pred_region
      %58 = dma.done [#allocation5], 2048
    $region33: #{variational_encoder_forward.1} parent=1 // pred_fallthru
      _
    %v59 = vld [vmem:[#allocation2] sm:$0xff]
    %v60 = vld [vmem:[#allocation4] sm:$0xff]
    %v61 = vld [vmem:[#allocation4 + $0x8] sm:$0xff]
    %v62 = vld [vmem:[#allocation4 + $0x10] sm:$0xff]
    %v63 = vld [vmem:[#allocation4 + $0x18] sm:$0xff]
    %v64 = vld [vmem:[#allocation4 + $0x20] sm:$0xff]
    %v65 = vld [vmem:[#allocation4 + $0x28] sm:$0xff]
    %v66 = vld [vmem:[#allocation4 + $0x30] sm:$0xff]
    %v67 = vld [vmem:[#allocation4 + $0x38] sm:$0xff]
    %v68 = vld [vmem:[%s2] sm:$0x1]
    %v70 = vlaneseq
    %v71 = vshrl.u32 %v70, 7
    %v72 = vsub.s32 0, %v71
    %v73 = vrot.slane %v68, %v72
    %vm75 = vcmask 523264
    %v77 = vsel %vm75, %v59, 0
    %79 = vmatprep.subr.mxu0 0.0
    %80 = vmatpush1.msra.mxu0 0.0
    %81 = vmatprep.subr.mxu0 0.0
    %82 = vmatpush1.msra.mxu0 0.0
    %83 = vmatprep.subr.mxu0 0.0
    %84 = vmatpush1.msra.mxu0 0.0
    %85 = vmatprep.subr.mxu0 0.0
    %86 = vmatpush1.msra.mxu0 0.0
    %87 = vmatprep.subr.mxu0 0.0
    %88 = vmatpush1.msra.mxu0 0.0
    %89 = vmatprep.subr.mxu0 0.0
    %90 = vmatpush1.msra.mxu0 0.0
    %91 = vmatprep.subr.mxu0 0.0
    %92 = vmatpush1.msra.mxu0 0.0
    %93 = vmatprep.subr.mxu0 0.0
    %94 = vmatpush1.msra.mxu0 0.0
    %95 = vmatprep.subr.mxu0 0.0
    %96 = vmatpush1.msra.mxu0 %v67
    %97 = vmatprep.subr.mxu0 0.0
    %98 = vmatpush1.msra.mxu0 %v66
    %99 = vmatprep.subr.mxu0 0.0
    %100 = vmatpush1.msra.mxu0 %v65
    %101 = vmatprep.subr.mxu0 0.0
    %102 = vmatpush1.msra.mxu0 %v64
    %103 = vmatprep.subr.mxu0 0.0
    %104 = vmatpush1.msra.mxu0 %v63
    %105 = vmatprep.subr.mxu0 0.0
    %106 = vmatpush1.msra.mxu0 %v62
    %107 = vmatprep.subr.mxu0 0.0
    %108 = vmatpush1.msra.mxu0 %v61
    %109 = vmatprep.subr.mxu0 0.0
    %110 = vmatpush1.msra.mxu0 %v60
    %111 = vmatprep.subr.mxu0 0.0
    %112 = vmatpush2.msra.mxu0 0.0
    %113 = vmatprep.subr.mxu0 0.0
    %114 = vmatpush2.msra.mxu0 0.0
    %115 = vmatprep.subr.mxu0 0.0
    %116 = vmatpush2.msra.mxu0 0.0
    %117 = vmatprep.subr.mxu0 0.0
    %118 = vmatpush2.msra.mxu0 0.0
    %119 = vmatprep.subr.mxu0 0.0
    %120 = vmatpush2.msra.mxu0 0.0
    %121 = vmatprep.subr.mxu0 0.0
    %122 = vmatpush2.msra.mxu0 0.0
    %123 = vmatprep.subr.mxu0 0.0
    %124 = vmatpush2.msra.mxu0 0.0
    %125 = vmatprep.subr.mxu0 0.0
    %126 = vmatpush2.msra.mxu0 0.0
    %127 = vmatprep.subr.mxu0 0.0
    %128 = vmatpush2.msra.mxu0 0.0
    %129 = vmatprep.subr.mxu0 0.0
    %130 = vmatpush2.msra.mxu0 0.0
    %131 = vmatprep.subr.mxu0 0.0
    %132 = vmatpush2.msra.mxu0 0.0
    %133 = vmatprep.subr.mxu0 0.0
    %134 = vmatpush2.msra.mxu0 0.0
    %135 = vmatprep.subr.mxu0 0.0
    %136 = vmatpush2.msra.mxu0 0.0
    %137 = vmatprep.subr.mxu0 0.0
    %138 = vmatpush2.msra.mxu0 0.0
    %139 = vmatprep.subr.mxu0 0.0
    %140 = vmatpush2.msra.mxu0 0.0
    %141 = vmatprep.subr.mxu0 0.0
    %142 = vmatpush2.msra.mxu0 0.0
    %143 = vmatprep.mubr.f32.mxu0 0.0
    %144 = vmatmul.mubr.f32.gmra.mxu0 %v77
    %v145 = vpop.f32.mrf.mxu0
    %v146 = vadd.f32 %v73, %v145
    %v147 = vpop.f32.mrf.mxu0
    %148 = vdwg.mxu0
    %v149 = vmax.f32 %v146, 0.0
    %v150 = vld [vmem:[#allocation6] sm:$0xff]
    %v151 = vld [vmem:[#allocation6 + $0x8] sm:$0xff]
    %v152 = vld [vmem:[#allocation6 + $0x10] sm:$0xff]
    %v153 = vld [vmem:[#allocation6 + $0x18] sm:$0xff]
    %v154 = vld [vmem:[#allocation6 + $0x20] sm:$0xff]
    %v155 = vld [vmem:[#allocation6 + $0x28] sm:$0xff]
    %v156 = vld [vmem:[#allocation6 + $0x30] sm:$0xff]
    %v157 = vld [vmem:[#allocation6 + $0x38] sm:$0xff]
    %v158 = vld [vmem:[#allocation6 + $0x40] sm:$0xff]
    %v159 = vld [vmem:[#allocation6 + $0x48] sm:$0xff]
    %v160 = vld [vmem:[#allocation6 + $0x50] sm:$0xff]
    %v161 = vld [vmem:[#allocation6 + $0x58] sm:$0xff]
    %v162 = vld [vmem:[#allocation6 + $0x60] sm:$0xff]
    %v163 = vld [vmem:[#allocation6 + $0x68] sm:$0xff]
    %v164 = vld [vmem:[#allocation6 + $0x70] sm:$0xff]
    %v165 = vld [vmem:[#allocation6 + $0x78] sm:$0xff]
    %v166 = vld [vmem:[%s4] sm:$0x1]
    %v168 = vlaneseq
    %v169 = vshrl.u32 %v168, 7
    %v170 = vsub.s32 0, %v169
    %v171 = vrot.slane %v166, %v170
    %173 = vmatprep.subr.mxu0 0.0
    %174 = vmatpush1.msra.mxu0 %v165
    %175 = vmatprep.subr.mxu0 0.0
    %176 = vmatpush1.msra.mxu0 %v164
    %177 = vmatprep.subr.mxu0 0.0
    %178 = vmatpush1.msra.mxu0 %v163
    %179 = vmatprep.subr.mxu0 0.0
    %180 = vmatpush1.msra.mxu0 %v162
    %181 = vmatprep.subr.mxu0 0.0
    %182 = vmatpush1.msra.mxu0 %v161
    %183 = vmatprep.subr.mxu0 0.0
    %184 = vmatpush1.msra.mxu0 %v160
    %185 = vmatprep.subr.mxu0 0.0
    %186 = vmatpush1.msra.mxu0 %v159
    %187 = vmatprep.subr.mxu0 0.0
    %188 = vmatpush1.msra.mxu0 %v158
    %189 = vmatprep.subr.mxu0 0.0
    %190 = vmatpush1.msra.mxu0 %v157
    %191 = vmatprep.subr.mxu0 0.0
    %192 = vmatpush1.msra.mxu0 %v156
    %193 = vmatprep.subr.mxu0 0.0
    %194 = vmatpush1.msra.mxu0 %v155
    %195 = vmatprep.subr.mxu0 0.0
    %196 = vmatpush1.msra.mxu0 %v154
    %197 = vmatprep.subr.mxu0 0.0
    %198 = vmatpush1.msra.mxu0 %v153
    %199 = vmatprep.subr.mxu0 0.0
    %200 = vmatpush1.msra.mxu0 %v152
    %201 = vmatprep.subr.mxu0 0.0
    %202 = vmatpush1.msra.mxu0 %v151
    %203 = vmatprep.subr.mxu0 0.0
    %204 = vmatpush1.msra.mxu0 %v150
    %205 = vmatprep.subr.mxu0 0.0
    %206 = vmatpush2.msra.mxu0 0.0
    %207 = vmatprep.subr.mxu0 0.0
    %208 = vmatpush2.msra.mxu0 0.0
    %209 = vmatprep.subr.mxu0 0.0
    %210 = vmatpush2.msra.mxu0 0.0
    %211 = vmatprep.subr.mxu0 0.0
    %212 = vmatpush2.msra.mxu0 0.0
    %213 = vmatprep.subr.mxu0 0.0
    %214 = vmatpush2.msra.mxu0 0.0
    %215 = vmatprep.subr.mxu0 0.0
    %216 = vmatpush2.msra.mxu0 0.0
    %217 = vmatprep.subr.mxu0 0.0
    %218 = vmatpush2.msra.mxu0 0.0
    %219 = vmatprep.subr.mxu0 0.0
    %220 = vmatpush2.msra.mxu0 0.0
    %221 = vmatprep.subr.mxu0 0.0
    %222 = vmatpush2.msra.mxu0 0.0
    %223 = vmatprep.subr.mxu0 0.0
    %224 = vmatpush2.msra.mxu0 0.0
    %225 = vmatprep.subr.mxu0 0.0
    %226 = vmatpush2.msra.mxu0 0.0
    %227 = vmatprep.subr.mxu0 0.0
    %228 = vmatpush2.msra.mxu0 0.0
    %229 = vmatprep.subr.mxu0 0.0
    %230 = vmatpush2.msra.mxu0 0.0
    %231 = vmatprep.subr.mxu0 0.0
    %232 = vmatpush2.msra.mxu0 0.0
    %233 = vmatprep.subr.mxu0 0.0
    %234 = vmatpush2.msra.mxu0 0.0
    %235 = vmatprep.subr.mxu0 0.0
    %236 = vmatpush2.msra.mxu0 0.0
    %237 = vmatprep.mubr.f32.mxu0 0.0
    %238 = vmatmul.mubr.f32.gmra.mxu0 %v149
    %v239 = vpop.f32.mrf.mxu0
    %v240 = vadd.f32 %v171, %v239
    %v241 = vpop.f32.mrf.mxu0
    %242 = vdwg.mxu0
    %243 = vst [vmem:[%s5] sm:$0xff] %v240
    // Predicated region
    $region34: #{variational_encoder_forward.1} parent=1 // pred_check
      _
    $region35: #{variational_encoder_forward.1} parent=1 // pred_check_branch
      %245 = sbr.rel (0) target = $region37
    $region36: #{variational_encoder_forward.1} parent=1 // pred_region
      _
    $region37: #{variational_encoder_forward.1} parent=1 // pred_fallthru
      _
    // Predicated region
    $region38: #{variational_encoder_forward.1} parent=1 // pred_check
      _
    $region39: #{variational_encoder_forward.1} parent=1 // pred_check_branch
      %247 = sbr.rel (0) target = $region41
    $region40: #{variational_encoder_forward.1} parent=1 // pred_region
      _
    $region41: #{variational_encoder_forward.1} parent=1 // pred_fallthru
      _
    %248 = vsyncpa [#allocation3], 1
    %249 = vsyncpa [#allocation5], 1

</llo_original>
